<compile_context>
chip_gen: v7x
topology: tpu7x:2x2x1
jax: 0.10.0
libtpu: 0.0.40
codegen_flags: <defaults>
</compile_context>

<pallas_src>
import functools

import jax
import jax.numpy as jnp
from jax.experimental import pallas as pl
from jax.experimental.pallas import tpu as pltpu

_LANES = 128
_SUBLANES = 8
# (4096, 128) f32 block = 2 MiB per input per pipeline buffer; 2 inputs x 2
# buffers = 8 MiB double-buffered working set.
_TARGET_BLOCK_ROWS = 4096
# Leading "parallel" grid axis: the two TensorCores of a v7x chip each stream
# half of the row-blocks; on single-core chips (v5e/v6e) it is a cheap outer
# loop of at most 2 iterations.
_MAX_SPLITS = 2


def _nnpu_partial_sums_kernel(logits_ref, labels_ref, out_ref, *,
                              positive_class: int, n_valid: int,
                              block_rows: int, blocks_per_split: int):
    """Accumulates lane-dense partial sums for the nnPU loss.

    out_ref (VMEM f32[1, 4, 8, 128], resident across the reduction axis):
      [0] sum(labels == positive_class)
      [1] sum(labels == 1 - positive_class)
      [2] sum(positive  * sigmoid(logits))
      [3] sum(unlabeled * sigmoid(logits))
    sigmoid(-x) terms are reconstructed in the wrapper via 1 - sigmoid(x).
    """
    i = pl.program_id(0)          # TensorCore split   ("parallel")
    j = pl.program_id(1)          # row-block reduction ("arbitrary")

    @pl.when(j == 0)
    def _():
        out_ref[...] = jnp.zeros_like(out_ref)

    x = logits_ref[...].astype(jnp.float32)
    lab = labels_ref[...]
    if jnp.issubdtype(lab.dtype, jnp.integer) and lab.dtype.itemsize < 4:
        lab = lab.astype(jnp.int32)           # safe compares for narrow ints

    # Mask everything past the true element count: reshape padding, the ragged
    # final row-block and the (clamped) overhanging logical block all land here.
    shape = (block_rows, _LANES)
    row = jax.lax.broadcasted_iota(jnp.int32, shape, 0)
    col = jax.lax.broadcasted_iota(jnp.int32, shape, 1)
    base = (i * blocks_per_split + j) * (block_rows * _LANES)
    valid = (base + row * _LANES + col) < n_valid

    pos = ((lab == positive_class) & valid).astype(jnp.float32)
    unl = ((lab == (1 - positive_class)) & valid).astype(jnp.float32)
    x = jnp.where(valid, x, 0.0)              # keep garbage lanes finite
    y = jax.nn.sigmoid(x)                     # single EUP transcendental

    def vreg_partial(q):
        # (block_rows, 128) -> (8, 128) using only whole-vreg VPU adds (the
        # reshape splits along full (8,128) vregs); the expensive cross-lane
        # reduce is deferred to the wrapper, once per call.
        return jnp.sum(q.reshape(-1, _SUBLANES, _LANES), axis=0)

    out_ref[0, 0] += vreg_partial(pos)
    out_ref[0, 1] += vreg_partial(unl)
    out_ref[0, 2] += vreg_partial(pos * y)
    out_ref[0, 3] += vreg_partial(unl * y)


def nnpu_loss(logits, labels, *, prior: float, gamma: float, beta: float,
              positive_class: int):
    """JAX/Pallas equivalent of NNPULoss.forward (forward-value semantics)."""
    del gamma  # TODO(synk): gamma/.detach() only affect gradients of the
    #            negative_risk < -beta branch; matching torch autograd there
    #            would need a custom VJP. The forward value does not use gamma.

    flat_logits = logits.reshape(-1)          # keep native dtype (bf16 ok)
    flat_labels = labels.reshape(-1)
    assert flat_logits.shape == flat_labels.shape
    n = int(flat_logits.shape[0])
    assert n > 0

    # Lay out as a lane-dense (rows, 128) slab. Pad only to the next 8*128
    # boundary (typical NN sizes are already aligned -> no copy at all); padded
    # and overhanging elements are masked in-kernel, so pad values are
    # irrelevant.
    chunk = _SUBLANES * _LANES
    pad = (-n) % chunk
    if pad:
        flat_logits = jnp.pad(flat_logits, (0, pad))
        flat_labels = jnp.pad(flat_labels, (0, pad))
    rows = (n + pad) // _LANES

    block_rows = rows if rows <= _TARGET_BLOCK_ROWS else _TARGET_BLOCK_ROWS
    total_blocks = -(-rows // block_rows)
    num_splits = min(_MAX_SPLITS, total_blocks)
    blocks_per_split = -(-total_blocks // num_splits)
    grid = (num_splits, blocks_per_split)

    logits2d = flat_logits.reshape(rows, _LANES)
    labels2d = flat_labels.reshape(rows, _LANES)

    def block_index(i, j):
        # At most one logical block overhangs the array (odd block count split
        # over two cores): clamp its DMA onto the last real block; its
        # contribution is masked to zero inside the kernel.
        return (jnp.minimum(i * blocks_per_split + j, total_blocks - 1), 0)

    kernel = functools.partial(
        _nnpu_partial_sums_kernel,
        positive_class=positive_class,
        n_valid=n,
        block_rows=block_rows,
        blocks_per_split=blocks_per_split,
    )

    partials = pl.pallas_call(
        kernel,
        out_shape=jax.ShapeDtypeStruct(
            (num_splits, 4, _SUBLANES, _LANES), jnp.float32),
        grid_spec=pltpu.PrefetchScalarGridSpec(
            num_scalar_prefetch=0,
            grid=grid,
            in_specs=[
                pl.BlockSpec((block_rows, _LANES), block_index),
                pl.BlockSpec((block_rows, _LANES), block_index),
            ],
            out_specs=pl.BlockSpec((1, 4, _SUBLANES, _LANES),
                                   lambda i, j: (i, 0, 0, 0)),
        ),
        compiler_params=pltpu.CompilerParams(
            dimension_semantics=("parallel", "arbitrary")),
    )(logits2d, labels2d)

    sums = jnp.sum(partials, axis=(0, 2, 3))  # tiny final reduce -> (4,)
    s_pos, s_unl, s_pos_y, s_unl_y = sums[0], sums[1], sums[2], sums[3]

    n_positive = jnp.maximum(1.0, s_pos)
    n_unlabeled = jnp.maximum(1.0, s_unl)

    # sum(pos * sigmoid(-x)) == sum(pos) - sum(pos * sigmoid(x))
    positive_risk = prior * (s_pos - s_pos_y) / n_positive
    negative_risk = s_unl_y / n_unlabeled - prior * s_pos_y / n_positive

    # Forward value of the PyTorch branch (negative_risk < -beta case:
    # (pos - beta + g*neg).detach() - g*neg == pos - beta as a value).
    return jnp.where(negative_risk < -beta,
                     positive_risk - beta,
                     positive_risk + negative_risk)


def _nnpu_loss_ref(logits, labels, *, prior, beta, positive_class):
    """Pure-JAX reference (same math, no Pallas)."""
    x = logits.reshape(-1).astype(jnp.float32)
    lab = labels.reshape(-1)
    pos = (lab == positive_class).astype(jnp.float32)
    unl = (lab == (1 - positive_class)).astype(jnp.float32)
    n_p = jnp.maximum(1.0, pos.sum())
    n_u = jnp.maximum(1.0, unl.sum())
    y_pos = jax.nn.sigmoid(-x)
    y_unl = jax.nn.sigmoid(x)
    pr = jnp.sum(prior * pos / n_p * y_pos)
    nr = jnp.sum((unl / n_u - prior * pos / n_p) * y_unl)
    return jnp.where(nr < -beta, pr - beta, pr + nr)


if __name__ == "__main__":
    key = jax.random.PRNGKey(0)
    k1, k2, k3, k4 = jax.random.split(key, 4)

    prior, gamma, beta, positive_class = 0.3, 1.0, 0.0, 1

    # Test 1: module-scale input (classifier logits over a 2x4x16x16 batch).
    logits1 = jax.random.normal(k1, (2, 4, 16, 16), dtype=jnp.float32)
    labels1 = jax.random.bernoulli(k2, 0.3, (2 * 4 * 16 * 16,)).astype(jnp.int32)
    loss1 = jax.block_until_ready(
        nnpu_loss(logits1, labels1, prior=prior, gamma=gamma, beta=beta,
                  positive_class=positive_class))
    ref1 = _nnpu_loss_ref(logits1, labels1, prior=prior, beta=beta,
                          positive_class=positive_class)
    assert jnp.allclose(loss1, ref1, rtol=1e-5, atol=1e-5), (loss1, ref1)

    # Test 2: larger ragged input with native-bf16 logits -> exercises the
    # multi-block grid, the 2-way TensorCore split, the clamped overhang block
    # and the in-kernel tail mask.
    n2 = 3 * _TARGET_BLOCK_ROWS * _LANES - 777
    logits2 = jax.random.normal(k3, (n2,), dtype=jnp.bfloat16)
    labels2 = jax.random.bernoulli(k4, 0.4, (n2,)).astype(jnp.int32)
    loss2 = jax.block_until_ready(
        nnpu_loss(logits2, labels2, prior=prior, gamma=gamma, beta=beta,
                  positive_class=positive_class))
    ref2 = _nnpu_loss_ref(logits2, labels2, prior=prior, beta=beta,
                          positive_class=positive_class)
    assert jnp.allclose(loss2, ref2, rtol=2e-4, atol=2e-4), (loss2, ref2)

    print("KERNEL_OK")
</pallas_src>

<mosaic_0001>
module attributes {stable_mosaic.version = 11 : i64} {
  func.func @_nnpu_partial_sums_kernel(%arg0: i32, %arg1: i32, %arg2: memref<16x128xf32, #tpu.memory_space<vmem>>, %arg3: memref<16x128xi32, #tpu.memory_space<vmem>>, %arg4: memref<1x4x8x128xf32, #tpu.memory_space<vmem>>) attributes {dimension_semantics = [#tpu.dimension_semantics<parallel>, #tpu.dimension_semantics<arbitrary>], iteration_bounds = array<i64: 1, 1>, scalar_prefetch = 0 : i64, scratch_operands = 0 : i64, tpu.core_type = #tpu.core_type<tc>, window_params = [{transform_indices = @transform_0, window_bounds = array<i64: 16, 128>}, {transform_indices = @transform_1, window_bounds = array<i64: 16, 128>}, {transform_indices = @transform_2, window_bounds = array<i64: 1, 4, 8, 128>}]} {
    %c0_i32 = arith.constant 0 : i32
    %0 = arith.cmpi eq, %arg1, %c0_i32 : i32
    %1 = arith.extui %0 : i1 to i32
    %c0_i32_0 = arith.constant 0 : i32
    %2 = arith.cmpi ne, %1, %c0_i32_0 : i32
    scf.if %2 {
      %cst_41 = arith.constant 0.000000e+00 : f32
      %68 = vector.broadcast %cst_41 : f32 to vector<1x4x8x128xf32>
      %c0_42 = arith.constant 0 : index
      %c0_43 = arith.constant 0 : index
      %c0_44 = arith.constant 0 : index
      %c0_45 = arith.constant 0 : index
      %69 = vector.load %arg4[%c0_42, %c0_43, %c0_44, %c0_45] : memref<1x4x8x128xf32, #tpu.memory_space<vmem>>, vector<1x4x8x128xf32>
      tpu.vector_store %arg4[%c0_42, %c0_43, %c0_44, %c0_45], %68 {strides = array<i32>} : memref<1x4x8x128xf32, #tpu.memory_space<vmem>>, vector<1x4x8x128xf32>,
    } else {
    }
    %c0 = arith.constant 0 : index
    %c0_1 = arith.constant 0 : index
    %3 = vector.load %arg2[%c0, %c0_1] : memref<16x128xf32, #tpu.memory_space<vmem>>, vector<16x128xf32>
    %c0_2 = arith.constant 0 : index
    %c0_3 = arith.constant 0 : index
    %4 = vector.load %arg3[%c0_2, %c0_3] : memref<16x128xi32, #tpu.memory_space<vmem>>, vector<16x128xi32>
    %5 = tpu.iota {dimensions = array<i32: 0>} : vector<16x128xi32>
    %6 = tpu.iota {dimensions = array<i32: 1>} : vector<16x128xi32>
    %c1_i32 = arith.constant 1 : i32
    %7 = arith.muli %arg0, %c1_i32 : i32
    %8 = arith.addi %7, %arg1 : i32
    %c2048_i32 = arith.constant 2048 : i32
    %9 = arith.muli %8, %c2048_i32 : i32
    %c128_i32 = arith.constant 128 : i32
    %10 = vector.broadcast %c128_i32 : i32 to vector<16x128xi32>
    %11 = arith.muli %5, %10 : vector<16x128xi32>
    %12 = vector.broadcast %9 : i32 to vector<16x128xi32>
    %13 = arith.addi %12, %11 : vector<16x128xi32>
    %14 = arith.addi %13, %6 : vector<16x128xi32>
    %c2048_i32_4 = arith.constant 2048 : i32
    %15 = vector.broadcast %c2048_i32_4 : i32 to vector<16x128xi32>
    %16 = arith.cmpi slt, %14, %15 : vector<16x128xi32>
    %c1_i32_5 = arith.constant 1 : i32
    %17 = vector.broadcast %c1_i32_5 : i32 to vector<16x128xi32>
    %18 = arith.cmpi eq, %4, %17 : vector<16x128xi32>
    %19 = arith.andi %18, %16 : vector<16x128xi1>
    %20 = arith.extui %19 : vector<16x128xi1> to vector<16x128xi32>
    %21 = arith.sitofp %20 : vector<16x128xi32> to vector<16x128xf32>
    %c0_i32_6 = arith.constant 0 : i32
    %22 = vector.broadcast %c0_i32_6 : i32 to vector<16x128xi32>
    %23 = arith.cmpi eq, %4, %22 : vector<16x128xi32>
    %24 = arith.andi %23, %16 : vector<16x128xi1>
    %25 = arith.extui %24 : vector<16x128xi1> to vector<16x128xi32>
    %26 = arith.sitofp %25 : vector<16x128xi32> to vector<16x128xf32>
    %cst = arith.constant 0.000000e+00 : f32
    %27 = vector.broadcast %cst : f32 to vector<16x128xf32>
    %28 = arith.select %16, %3, %27 : vector<16x128xi1>, vector<16x128xf32>
    %29 = arith.negf %28 : vector<16x128xf32>
    %30 = math.exp %29 : vector<16x128xf32>
    %cst_7 = arith.constant 1.000000e+00 : f32
    %31 = vector.broadcast %cst_7 : f32 to vector<16x128xf32>
    %32 = arith.addf %31, %30 : vector<16x128xf32>
    %33 = arith.divf %31, %32 : vector<16x128xf32>
    %c0_8 = arith.constant 0 : index
    %c0_9 = arith.constant 0 : index
    %c0_10 = arith.constant 0 : index
    %c0_11 = arith.constant 0 : index
    %34 = vector.load %arg4[%c0_8, %c0_9, %c0_10, %c0_11] : memref<1x4x8x128xf32, #tpu.memory_space<vmem>>, vector<1x1x8x128xf32>
    %35 = vector.shape_cast %34 : vector<1x1x8x128xf32> to vector<8x128xf32>
    %36 = vector.shape_cast %21 : vector<16x128xf32> to vector<2x8x128xf32>
    %cst_12 = arith.constant dense<0.000000e+00> : vector<8x128xf32>
    %37 = vector.multi_reduction <add>, %36, %cst_12 [0] : vector<2x8x128xf32> to vector<8x128xf32>
    %38 = arith.addf %35, %37 : vector<8x128xf32>
    %c0_13 = arith.constant 0 : index
    %c0_14 = arith.constant 0 : index
    %c0_15 = arith.constant 0 : index
    %c0_16 = arith.constant 0 : index
    %39 = vector.load %arg4[%c0_13, %c0_14, %c0_15, %c0_16] : memref<1x4x8x128xf32, #tpu.memory_space<vmem>>, vector<1x1x8x128xf32>
    %40 = vector.shape_cast %39 : vector<1x1x8x128xf32> to vector<8x128xf32>
    %41 = vector.shape_cast %38 : vector<8x128xf32> to vector<1x1x8x128xf32>
    tpu.vector_store %arg4[%c0_13, %c0_14, %c0_15, %c0_16], %41 {strides = array<i32>} : memref<1x4x8x128xf32, #tpu.memory_space<vmem>>, vector<1x1x8x128xf32>,
    %c0_17 = arith.constant 0 : index
    %c1 = arith.constant 1 : index
    %c0_18 = arith.constant 0 : index
    %c0_19 = arith.constant 0 : index
    %42 = vector.load %arg4[%c0_17, %c1, %c0_18, %c0_19] : memref<1x4x8x128xf32, #tpu.memory_space<vmem>>, vector<1x1x8x128xf32>
    %43 = vector.shape_cast %42 : vector<1x1x8x128xf32> to vector<8x128xf32>
    %44 = vector.shape_cast %26 : vector<16x128xf32> to vector<2x8x128xf32>
    %cst_20 = arith.constant dense<0.000000e+00> : vector<8x128xf32>
    %45 = vector.multi_reduction <add>, %44, %cst_20 [0] : vector<2x8x128xf32> to vector<8x128xf32>
    %46 = arith.addf %43, %45 : vector<8x128xf32>
    %c0_21 = arith.constant 0 : index
    %c1_22 = arith.constant 1 : index
    %c0_23 = arith.constant 0 : index
    %c0_24 = arith.constant 0 : index
    %47 = vector.load %arg4[%c0_21, %c1_22, %c0_23, %c0_24] : memref<1x4x8x128xf32, #tpu.memory_space<vmem>>, vector<1x1x8x128xf32>
    %48 = vector.shape_cast %47 : vector<1x1x8x128xf32> to vector<8x128xf32>
    %49 = vector.shape_cast %46 : vector<8x128xf32> to vector<1x1x8x128xf32>
    tpu.vector_store %arg4[%c0_21, %c1_22, %c0_23, %c0_24], %49 {strides = array<i32>} : memref<1x4x8x128xf32, #tpu.memory_space<vmem>>, vector<1x1x8x128xf32>,
    %c0_25 = arith.constant 0 : index
    %c2 = arith.constant 2 : index
    %c0_26 = arith.constant 0 : index
    %c0_27 = arith.constant 0 : index
    %50 = vector.load %arg4[%c0_25, %c2, %c0_26, %c0_27] : memref<1x4x8x128xf32, #tpu.memory_space<vmem>>, vector<1x1x8x128xf32>
    %51 = vector.shape_cast %50 : vector<1x1x8x128xf32> to vector<8x128xf32>
    %52 = arith.mulf %21, %33 : vector<16x128xf32>
    %53 = vector.shape_cast %52 : vector<16x128xf32> to vector<2x8x128xf32>
    %cst_28 = arith.constant dense<0.000000e+00> : vector<8x128xf32>
    %54 = vector.multi_reduction <add>, %53, %cst_28 [0] : vector<2x8x128xf32> to vector<8x128xf32>
    %55 = arith.addf %51, %54 : vector<8x128xf32>
    %c0_29 = arith.constant 0 : index
    %c2_30 = arith.constant 2 : index
    %c0_31 = arith.constant 0 : index
    %c0_32 = arith.constant 0 : index
    %56 = vector.load %arg4[%c0_29, %c2_30, %c0_31, %c0_32] : memref<1x4x8x128xf32, #tpu.memory_space<vmem>>, vector<1x1x8x128xf32>
    %57 = vector.shape_cast %56 : vector<1x1x8x128xf32> to vector<8x128xf32>
    %58 = vector.shape_cast %55 : vector<8x128xf32> to vector<1x1x8x128xf32>
    tpu.vector_store %arg4[%c0_29, %c2_30, %c0_31, %c0_32], %58 {strides = array<i32>} : memref<1x4x8x128xf32, #tpu.memory_space<vmem>>, vector<1x1x8x128xf32>,
    %c0_33 = arith.constant 0 : index
    %c3 = arith.constant 3 : index
    %c0_34 = arith.constant 0 : index
    %c0_35 = arith.constant 0 : index
    %59 = vector.load %arg4[%c0_33, %c3, %c0_34, %c0_35] : memref<1x4x8x128xf32, #tpu.memory_space<vmem>>, vector<1x1x8x128xf32>
    %60 = vector.shape_cast %59 : vector<1x1x8x128xf32> to vector<8x128xf32>
    %61 = arith.mulf %26, %33 : vector<16x128xf32>
    %62 = vector.shape_cast %61 : vector<16x128xf32> to vector<2x8x128xf32>
    %cst_36 = arith.constant dense<0.000000e+00> : vector<8x128xf32>
    %63 = vector.multi_reduction <add>, %62, %cst_36 [0] : vector<2x8x128xf32> to vector<8x128xf32>
    %64 = arith.addf %60, %63 : vector<8x128xf32>
    %c0_37 = arith.constant 0 : index
    %c3_38 = arith.constant 3 : index
    %c0_39 = arith.constant 0 : index
    %c0_40 = arith.constant 0 : index
    %65 = vector.load %arg4[%c0_37, %c3_38, %c0_39, %c0_40] : memref<1x4x8x128xf32, #tpu.memory_space<vmem>>, vector<1x1x8x128xf32>
    %66 = vector.shape_cast %65 : vector<1x1x8x128xf32> to vector<8x128xf32>
    %67 = vector.shape_cast %64 : vector<8x128xf32> to vector<1x1x8x128xf32>
    tpu.vector_store %arg4[%c0_37, %c3_38, %c0_39, %c0_40], %67 {strides = array<i32>} : memref<1x4x8x128xf32, #tpu.memory_space<vmem>>, vector<1x1x8x128xf32>,
    return
  }
  func.func @transform_0(%arg0: i32, %arg1: i32) -> (i32, i32) {
    %c1_i32 = arith.constant 1 : i32
    %0 = arith.muli %arg0, %c1_i32 : i32
    %1 = arith.addi %0, %arg1 : i32
    %c0_i32 = arith.constant 0 : i32
    %2 = arith.minsi %1, %c0_i32 : i32
    %c0_i32_0 = arith.constant 0 : i32
    %c0_i32_1 = arith.constant 0 : i32
    return %2, %c0_i32_0 : i32, i32
  }
  func.func @transform_1(%arg0: i32, %arg1: i32) -> (i32, i32) {
    %c1_i32 = arith.constant 1 : i32
    %0 = arith.muli %arg0, %c1_i32 : i32
    %1 = arith.addi %0, %arg1 : i32
    %c0_i32 = arith.constant 0 : i32
    %2 = arith.minsi %1, %c0_i32 : i32
    %c0_i32_0 = arith.constant 0 : i32
    %c0_i32_1 = arith.constant 0 : i32
    return %2, %c0_i32_0 : i32, i32
  }
  func.func @transform_2(%arg0: i32, %arg1: i32) -> (i32, i32, i32, i32) {
    %c0_i32 = arith.constant 0 : i32
    %c0_i32_0 = arith.constant 0 : i32
    %c0_i32_1 = arith.constant 0 : i32
    %c0_i32_2 = arith.constant 0 : i32
    return %arg0, %c0_i32, %c0_i32_0, %c0_i32_1 : i32, i32, i32, i32
  }
}

</mosaic_0001>

<llo_original>
// kernel: tpu_custom_call.1
$region0: #{tpu_custom_call.1}
  #allocation0 [shape = 'u32[]', space=smem, size = 0x4, offset = 0x4, fixed_abs, tag = 'smem constant byte address 0x4 - core index']
  #allocation1 [shape = 'u32[144,128]{1,0:T(1,128)}', space=vmem, size = 0x12000, scoped, tag = 'internal scratch']
  %s0 = inlined_call_operand.hbm [shape: f32[16,128], index: 0, kind: input, shape index: {}]
  %s1 = inlined_call_operand.hbm [shape: s32[16,128], index: 1, kind: input, shape index: {}]
  %s2 = inlined_call_operand.hbm [shape: f32[1,4,8,128], index: 2, kind: output, shape index: {}]
  %s3 = sld [smem:[#allocation0]]
  $region30: #{tpu_custom_call.1} parent=0
    _
  %s5 = ssub.s32 1, %s3
  %s6 = scalar_select 0, %s5, %s3
  $region1: #{tpu_custom_call.1} parent=0
    #allocation2 [shape = 'u8[8192]{0}', space=vmem, size = 0x2000, scoped, tag = 'input window, operand 0, single buffered']
    #allocation3 [shape = 's32[1]{0}', space=sflag, size = 0x4, scoped, tag = 'scoped memory for tpu_custom_call.1']
    #allocation4 [shape = 's32[1]{0}', space=sflag, size = 0x4, scoped, tag = 'scoped memory for tpu_custom_call.1']
    #allocation5 [shape = 'u8[8192]{0}', space=vmem, size = 0x2000, scoped, tag = 'input window, operand 1, single buffered']
    #allocation6 [shape = 's32[1]{0}', space=sflag, size = 0x4, scoped, tag = 'scoped memory for tpu_custom_call.1']
    #allocation7 [shape = 'u8[16384]{0}', space=vmem, size = 0x4000, scoped, tag = 'output window, operand 0, single buffered']
    %7 = vsyncpa [#allocation3], 0
    %8 = vsyncpa [#allocation6], 0
    %9 = vsyncpa [#allocation4], 0
    // Predicated region
    $region2: #{tpu_custom_call.1} parent=1 // pred_check
      _
    $region3: #{tpu_custom_call.1} parent=1 // pred_check_branch
      %11 = sbr.rel (0) target = $region5
    $region4: #{tpu_custom_call.1} parent=1 // pred_region
      %s12 = sadd.s32 0, 0
      %p13 = scmp.lt.s32.totalorder %s12, 0
      %s14 = scalar_select %p13, %s12, 0
      %s15 = smul.u32 2, %s14
      %s17 = ssub.s32 256, 256
      %18 = vsyncadd [#allocation3], %s17
      %s19 = smul.addr %s15, 128
      %s20 = scalar_lea.hbm %s0, %s19
      %s21 = sshll.u32 [#allocation2], 4
      %s22 = int_to_ptr.vmem [resolvable:$true] %s21
      %27 = dma.hbm_to_vmem [thread:$0]  %s20, 256, %s22, [#allocation3], 128, 128, 8
    $region5: #{tpu_custom_call.1} parent=1 // pred_fallthru
      _
    // Predicated region
    $region6: #{tpu_custom_call.1} parent=1 // pred_check
      _
    $region7: #{tpu_custom_call.1} parent=1 // pred_check_branch
      %29 = sbr.rel (0) target = $region9
    $region8: #{tpu_custom_call.1} parent=1 // pred_region
      %s30 = sadd.s32 0, 0
      %p31 = scmp.lt.s32.totalorder %s30, 0
      %s32 = scalar_select %p31, %s30, 0
      %s33 = smul.u32 2, %s32
      %s35 = ssub.s32 256, 256
      %36 = vsyncadd [#allocation6], %s35
      %s37 = smul.addr %s33, 128
      %s38 = scalar_lea.hbm %s1, %s37
      %s39 = sshll.u32 [#allocation5], 4
      %s40 = int_to_ptr.vmem [resolvable:$true] %s39
      %45 = dma.hbm_to_vmem [thread:$0]  %s38, 256, %s40, [#allocation6], 128, 128, 8
    $region9: #{tpu_custom_call.1} parent=1 // pred_fallthru
      _
    // Predicated region
    $region10: #{tpu_custom_call.1} parent=1 // pred_check
      _
    $region11: #{tpu_custom_call.1} parent=1 // pred_check_branch
      %47 = sbr.rel (0) target = $region13
    $region12: #{tpu_custom_call.1} parent=1 // pred_region
      %48 = dma.done [#allocation3], 256
    $region13: #{tpu_custom_call.1} parent=1 // pred_fallthru
      _
    // Predicated region
    $region14: #{tpu_custom_call.1} parent=1 // pred_check
      _
    $region15: #{tpu_custom_call.1} parent=1 // pred_check_branch
      %50 = sbr.rel (0) target = $region17
    $region16: #{tpu_custom_call.1} parent=1 // pred_region
      %51 = dma.done [#allocation6], 256
    $region17: #{tpu_custom_call.1} parent=1 // pred_fallthru
      _
    %s52 = sadd.s32 0, 0
    %p53 = scmp.lt.s32.totalorder %s52, 0
    %s54 = scalar_select %p53, %s52, 0
    %s55 = smul.u32 2, %s54
    %s56 = sadd.s32 0, 0
    %p57 = scmp.lt.s32.totalorder %s56, 0
    %s58 = scalar_select %p57, %s56, 0
    %s59 = smul.u32 2, %s58
    %p60 = scmp.eq.s32.totalorder 0, 0
    // Predicated region
    $region18: #{tpu_custom_call.1} parent=1 // pred_check
      %p61 = pneg %p60
    $region19: #{tpu_custom_call.1} parent=1 // pred_check_branch
      %63 = sbr.rel (%p61) target = $region21
    $region20: #{tpu_custom_call.1} parent=1 // pred_region
      %64 = vst [vmem:[#allocation7] sm:$0xff] 0.0
      %65 = vst [vmem:[#allocation7 + $0x8] sm:$0xff] 0.0
      %66 = vst [vmem:[#allocation7 + $0x10] sm:$0xff] 0.0
      %67 = vst [vmem:[#allocation7 + $0x18] sm:$0xff] 0.0
    $region21: #{tpu_custom_call.1} parent=1 // pred_fallthru
      _
    %v68 = vld [vmem:[#allocation2] sm:$0xff]
    %v69 = vld [vmem:[#allocation2 + $0x8] sm:$0xff]
    %v70 = vld [vmem:[#allocation5] sm:$0xff]
    %v71 = vld [vmem:[#allocation5 + $0x8] sm:$0xff]
    %v72 = vlaneseq
    %v73 = vshrl.u32 %v72, 7
    %v74 = vadd.s32 %v73, 8
    %v75 = vlaneseq
    %v76 = vand.u32 %v75, 127
    %s77 = sadd.s32 0, 0
    %s78 = smul.u32 %s77, 2048
    %v79 = vmul.u32 %v73, 128
    %v80 = vmul.u32 %v74, 128
    %v81 = vstv %s78
    %v82 = vadd.s32 %v81, %v79
    %v83 = vadd.s32 %v81, %v80
    %v84 = vadd.s32 %v82, %v76
    %v85 = vadd.s32 %v83, %v76
    %vm86 = vcmp.lt.s32.totalorder %v84, 2048
    %vm87 = vcmp.lt.s32.totalorder %v85, 2048
    %vm88 = vcmp.eq.s32.totalorder %v70, 1
    %vm89 = vcmp.eq.s32.totalorder %v71, 1
    %vm90 = vmand %vm88, %vm86
    %vm91 = vmand %vm89, %vm87
    %v92 = vsel %vm90, 1, 0
    %v93 = vsel %vm91, 1, 0
    %v94 = vcvt.s32.f32 %v92
    %v95 = vcvt.s32.f32 %v93
    %vm96 = vcmp.eq.s32.totalorder %v70, 0
    %vm97 = vcmp.eq.s32.totalorder %v71, 0
    %vm98 = vmand %vm96, %vm86
    %vm99 = vmand %vm97, %vm87
    %v100 = vsel %vm98, 1, 0
    %v101 = vsel %vm99, 1, 0
    %v102 = vcvt.s32.f32 %v100
    %v103 = vcvt.s32.f32 %v101
    %v104 = vsel %vm86, %v68, 0.0
    %v105 = vsel %vm87, %v69, 0.0
    %v106 = vxor.u32 %v104, 2147483648
    %v107 = vxor.u32 %v105, 2147483648
    %v108 = vmul.f32 %v106, 1.442695
    %v109 = vpow.pop %v108
    %v110 = vmul.f32 %v107, 1.442695
    %v111 = vpow.pop %v110
    %v112 = vadd.f32 %v109, 1.0
    %v113 = vadd.f32 %v111, 1.0
    %v114 = vrcp.pop %v112
    %v115 = vmul.f32 1.0, %v114
    %v116 = vrcp.pop %v113
    %v117 = vmul.f32 1.0, %v116
    %v118 = vld [vmem:[#allocation7] sm:$0xff]
    %v119 = vadd.f32 %v94, %v95
    %v120 = vadd.f32 %v118, %v119
    %121 = vst [vmem:[#allocation7] sm:$0xff] %v120
    %s122 = scalar_lea.vmem [#allocation7], 8
    %v123 = vld [vmem:[%s122] sm:$0xff]
    %v124 = vadd.f32 %v102, %v103
    %v125 = vadd.f32 %v123, %v124
    %126 = vst [vmem:[%s122] sm:$0xff] %v125
    %s127 = scalar_lea.vmem [#allocation7], 16
    %v128 = vld [vmem:[%s127] sm:$0xff]
    %v129 = vmul.f32 %v94, %v115
    %v130 = vmul.f32 %v95, %v117
    %v131 = vadd.f32 %v129, %v130
    %v132 = vadd.f32 %v128, %v131
    %133 = vst [vmem:[%s127] sm:$0xff] %v132
    %s134 = scalar_lea.vmem [#allocation7], 24
    %v135 = vld [vmem:[%s134] sm:$0xff]
    %v136 = vmul.f32 %v102, %v115
    %v137 = vmul.f32 %v103, %v117
    %v138 = vadd.f32 %v136, %v137
    %v139 = vadd.f32 %v135, %v138
    %140 = vst [vmem:[%s134] sm:$0xff] %v139
    // Predicated region
    $region22: #{tpu_custom_call.1} parent=1 // pred_check
      _
    $region23: #{tpu_custom_call.1} parent=1 // pred_check_branch
      %142 = sbr.rel (0) target = $region25
    $region24: #{tpu_custom_call.1} parent=1 // pred_region
      %s144 = ssub.s32 512, 512
      %145 = vsyncadd [#allocation4], %s144
      %s146 = sshll.u32 [#allocation7], 4
      %s147 = int_to_ptr.vmem [resolvable:$true] %s146
      %152 = dma.vmem_to_hbm [thread:$0]  %s147, 512, %s2, [#allocation4], 128, 128, 8
    $region25: #{tpu_custom_call.1} parent=1 // pred_fallthru
      _
    // Predicated region
    $region26: #{tpu_custom_call.1} parent=1 // pred_check
      _
    $region27: #{tpu_custom_call.1} parent=1 // pred_check_branch
      %154 = sbr.rel (0) target = $region29
    $region28: #{tpu_custom_call.1} parent=1 // pred_region
      %155 = dma.done [#allocation4], 512
    $region29: #{tpu_custom_call.1} parent=1 // pred_fallthru
      _
    %156 = vsyncpa [#allocation3], 1
    %157 = vsyncpa [#allocation6], 1
    %158 = vsyncpa [#allocation4], 1

</llo_original>
